<compile_context>
chip_gen: v6e
topology: v6e:2x2x1
jax: 0.10.0
libtpu: 0.0.40
codegen_flags: <defaults>
</compile_context>

<pallas_src>
import functools

import jax
import jax.numpy as jnp
import numpy as np
from jax import lax
from jax.experimental import pallas as pl
from jax.experimental.pallas import tpu as pltpu

LANES = 128                          # lane width (one full vreg row)
ROW_CHUNK = 64                       # rows per inner accumulation chunk (stats)
STATS_BLOCK_BYTES = 2 * 1024 * 1024  # ~2 MiB input tile, VALU-bound pass
APPLY_BLOCK_BYTES = 4 * 1024 * 1024  # ~4 MiB input tile, HBM-bound pass
VMEM_LIMIT_BYTES = 32 * 1024 * 1024  # explicit scoped-VMEM limit (v5e/v6e/v7x safe)


def _cdiv(a, b):
    return -(-a // b)


def _round_up(a, b):
    return _cdiv(a, b) * b


def _num_tc_splits():
    """2 on megacore / dual-TC parts (v4/v5p/v7x), 1 on single-TC (v5e/v6e)."""
    try:
        kind = jax.devices()[0].device_kind.lower()
    except Exception:
        return 2
    if any(t in kind for t in ("v5 lite", "v5e", "v6 lite", "v6e")):
        return 1
    return 2


def _stats_kernel(x_ref, out_ref, *, bits, qmin, qmax, qrange, block_rows,
                  chunk_rows, n_inner, rows_total, needs_mask):
    """Accumulate per-candidate cosine-similarity statistics.

    out_ref block: (1, 2*bits+1, 8, LANES), VMEM-resident across the inner
    (arbitrary) grid axis:
      rows [0, bits)       : sum(x * r_i), r_i = clip(round(x * inv_s_i))
      rows [bits, 2*bits)  : sum(r_i * r_i)
      row  2*bits          : sum(x * x)
    Candidate scales s_i / s_i^2 are folded in on the host.
    """
    @pl.when(pl.program_id(1) == 0)
    def _():
        out_ref[...] = jnp.zeros_like(out_ref)

    base_row = (pl.program_id(0) * n_inner + pl.program_id(1)) * block_rows

    def accumulate(c):
        r0 = c * chunk_rows
        if not isinstance(r0, int):
            r0 = pl.multiple_of(r0, chunk_rows)
        xb = x_ref[pl.ds(r0, chunk_rows), :].astype(jnp.float32)
        if needs_mask:
            gid = (base_row + c * chunk_rows +
                   lax.broadcasted_iota(jnp.int32, (chunk_rows, LANES), 0))
            xb = jnp.where(gid < rows_total, xb, 0.0)
        xr = xb.reshape(chunk_rows // 8, 8, LANES)      # tile-aligned, free
        out_ref[0, 2 * bits] += jnp.sum(xr * xr, axis=0)
        for i in range(bits):
            inv_s = qrange / (2.0 ** i)                 # exact power of two
            r = jnp.clip(jnp.round(xr * inv_s), qmin, qmax)
            out_ref[0, i] += jnp.sum(xr * r, axis=0)
            out_ref[0, bits + i] += jnp.sum(r * r, axis=0)

    nchunks = block_rows // chunk_rows
    if nchunks == 1:
        accumulate(0)
    else:
        lax.fori_loop(0, nchunks, lambda c, carry: (accumulate(c), carry)[1], 0)


def _apply_kernel(s_ref, x_ref, o_ref, *, qmin, qmax):
    """quantize -> round -> clamp -> dequantize; [inv_scale, scale] in SMEM."""
    inv_s = s_ref[0]
    s = s_ref[1]
    x = x_ref[...].astype(jnp.float32)
    o_ref[...] = (jnp.clip(jnp.round(x * inv_s), qmin, qmax) * s).astype(o_ref.dtype)


def quantizer_forward(x, bits, training=True, scale=None):
    """Pallas port of Quantizer.forward (training-mode cosine scale search)."""
    if bits == 32:
        return x, jnp.float32(1.0)
    assert bits != 1, "Binary quantization is not supported"

    qmin = float(-(1 << (bits - 1)))
    qmax = float((1 << (bits - 1)) - 1)
    qrange = float(max(abs(qmin), abs(qmax)))      # == 2 ** (bits - 1)

    itemsize = jnp.dtype(x.dtype).itemsize
    L = int(np.prod(x.shape))

    # Lane-dense 2D view (rows, 128).  Pad only if numel % 1024 != 0.
    pad = (-L) % (8 * LANES)
    x_flat = x.reshape(-1)
    if pad:
        # TODO(synk): this fallback costs an extra HBM pass for the pad and one
        # for the unpad slice; only taken for numel not a multiple of 1024.
        x_flat = jnp.pad(x_flat, (0, pad))
    rows = (L + pad) // LANES
    x2 = x_flat.reshape(rows, LANES)

    cand_scales = jnp.asarray([(2.0 ** i) / qrange for i in range(bits)],
                              dtype=jnp.float32)
    cand_inv = jnp.asarray([qrange / (2.0 ** i) for i in range(bits)],
                           dtype=jnp.float32)

    if training:
        # ---------------- pass 1: VALU-bound statistics ----------------
        br_stats = min(STATS_BLOCK_BYTES // (LANES * itemsize), rows)
        chunk_rows = next(c for c in (ROW_CHUNK, 32, 16, 8) if br_stats % c == 0)
        nb = _cdiv(rows, br_stats)
        splits = max(1, min(_num_tc_splits(), nb))
        n_inner = _cdiv(nb, splits)
        needs_mask = (splits * n_inner * br_stats != rows)

        if splits * n_inner == nb:
            in_idx = lambda s, j: (s * n_inner + j, 0)
        else:
            # Clamp phantom block indices in-bounds; the in-kernel row mask
            # zeroes their contribution.
            in_idx = lambda s, j: (jnp.minimum(s * n_inner + j, nb - 1), 0)

        stats = pl.pallas_call(
            functools.partial(_stats_kernel, bits=bits, qmin=qmin, qmax=qmax,
                              qrange=qrange, block_rows=br_stats,
                              chunk_rows=chunk_rows, n_inner=n_inner,
                              rows_total=rows, needs_mask=needs_mask),
            out_shape=jax.ShapeDtypeStruct(
                (splits, 2 * bits + 1, 8, LANES), jnp.float32),
            grid_spec=pl.GridSpec(
                grid=(splits, n_inner),
                in_specs=[pl.BlockSpec((br_stats, LANES), in_idx)],
                out_specs=pl.BlockSpec((1, 2 * bits + 1, 8, LANES),
                                       lambda s, j: (s, 0, 0, 0)),
            ),
            compiler_params=pltpu.CompilerParams(
                dimension_semantics=("parallel", "arbitrary"),
                vmem_limit_bytes=VMEM_LIMIT_BYTES),
        )(x2)

        totals = stats.sum(axis=(0, 2, 3))              # (2*bits + 1,)
        dots = totals[:bits] * cand_scales
        qsqs = totals[bits:2 * bits] * (cand_scales * cand_scales)
        xsq = totals[2 * bits]
        eps = 1e-8                                      # torch.cosine_similarity eps
        cos = dots / (jnp.maximum(jnp.sqrt(xsq), eps) *
                      jnp.maximum(jnp.sqrt(qsqs), eps))
        best = jnp.argmax(cos)                          # first max == torch '>' loop
        # TODO(synk): the PyTorch module also keeps a persistent cross-call
        # scale_list vote; single-call semantics are reproduced here.
        scale = cand_scales[best]
        inv_scale = cand_inv[best]
    else:
        # TODO(synk): eval mode should read the persistent `scale` buffer set
        # by a previous training call (cross-call Python state, not kernel work).
        if scale is None:
            scale = cand_scales[0]
        scale = jnp.asarray(scale, jnp.float32)
        inv_scale = 1.0 / scale

    # ---------------- pass 2: HBM-bound fake-quant apply ----------------
    br_apply = min(APPLY_BLOCK_BYTES // (LANES * itemsize), rows)
    nb_apply = _cdiv(rows, br_apply)
    out2 = pl.pallas_call(
        functools.partial(_apply_kernel, qmin=qmin, qmax=qmax),
        out_shape=jax.ShapeDtypeStruct(x2.shape, x.dtype),
        grid_spec=pl.GridSpec(
            grid=(nb_apply,),
            in_specs=[
                pl.BlockSpec(memory_space=pltpu.MemorySpace.SMEM),
                pl.BlockSpec((br_apply, LANES), lambda i: (i, 0)),
            ],
            out_specs=pl.BlockSpec((br_apply, LANES), lambda i: (i, 0)),
        ),
        compiler_params=pltpu.CompilerParams(
            dimension_semantics=("parallel",),
            vmem_limit_bytes=VMEM_LIMIT_BYTES),
    )(jnp.stack([inv_scale, scale]).astype(jnp.float32), x2)

    if pad:
        out = out2.reshape(-1)[:L].reshape(x.shape)
    else:
        out = out2.reshape(x.shape)
    return out, scale


def _reference(x_np, bits):
    """Pure numpy reference mirroring the PyTorch training forward."""
    qmin = float(-(1 << (bits - 1)))
    qmax = float((1 << (bits - 1)) - 1)
    qrange = max(abs(qmin), abs(qmax))
    flat = x_np.reshape(-1).astype(np.float32)
    best, best_cos = 0, -1.0
    for i in range(bits):
        s = (2.0 ** i) / qrange
        q = np.clip(np.round(flat / s), qmin, qmax) * s
        denom = (max(float(np.linalg.norm(flat)), 1e-8) *
                 max(float(np.linalg.norm(q)), 1e-8))
        cos = float(np.dot(flat, q)) / denom
        if cos > best_cos:
            best_cos, best = cos, i
    s = (2.0 ** best) / qrange
    out = np.clip(np.round(x_np.astype(np.float32) / s), qmin, qmax) * s
    return out.astype(x_np.dtype), s


if __name__ == "__main__":
    bits = 8
    key = jax.random.PRNGKey(0)
    # NCHW input (scale is uniform across channels, so it acts as a scalar).
    x = jax.random.normal(key, (2, 4, 16, 16), dtype=jnp.float32)

    out, scale = quantizer_forward(x, bits=bits, training=True)
    out = jax.block_until_ready(out)

    ref_out, ref_scale = _reference(np.asarray(x), bits)
    np.testing.assert_allclose(np.asarray(out), ref_out, rtol=1e-6, atol=1e-6)
    np.testing.assert_allclose(float(scale), ref_scale, rtol=1e-6, atol=0.0)

    print("KERNEL_OK")
</pallas_src>

<mosaic_0001>
module attributes {stable_mosaic.version = 11 : i64} {
  func.func @_stats_kernel(%arg0: i32, %arg1: i32, %arg2: memref<16x128xf32, #tpu.memory_space<vmem>>, %arg3: memref<1x17x8x128xf32, #tpu.memory_space<vmem>>) attributes {dimension_semantics = [#tpu.dimension_semantics<parallel>, #tpu.dimension_semantics<arbitrary>], iteration_bounds = array<i64: 1, 1>, scalar_prefetch = 0 : i64, scratch_operands = 0 : i64, tpu.core_type = #tpu.core_type<tc>, window_params = [{transform_indices = @transform_0, window_bounds = array<i64: 16, 128>}, {transform_indices = @transform_1, window_bounds = array<i64: 1, 17, 8, 128>}]} {
    %c0_i32 = arith.constant 0 : i32
    %0 = arith.cmpi eq, %arg1, %c0_i32 : i32
    %1 = arith.extui %0 : i1 to i32
    %c0_i32_0 = arith.constant 0 : i32
    %2 = arith.cmpi ne, %1, %c0_i32_0 : i32
    scf.if %2 {
      %cst_162 = arith.constant 0.000000e+00 : f32
      %197 = vector.broadcast %cst_162 : f32 to vector<1x17x8x128xf32>
      %c0_163 = arith.constant 0 : index
      %c0_164 = arith.constant 0 : index
      %c0_165 = arith.constant 0 : index
      %c0_166 = arith.constant 0 : index
      %198 = vector.load %arg3[%c0_163, %c0_164, %c0_165, %c0_166] : memref<1x17x8x128xf32, #tpu.memory_space<vmem>>, vector<1x17x8x128xf32>
      tpu.vector_store %arg3[%c0_163, %c0_164, %c0_165, %c0_166], %197 {strides = array<i32>} : memref<1x17x8x128xf32, #tpu.memory_space<vmem>>, vector<1x17x8x128xf32>,
    } else {
    }
    %c0 = arith.constant 0 : index
    %c0_1 = arith.constant 0 : index
    %3 = vector.load %arg2[%c0, %c0_1] : memref<16x128xf32, #tpu.memory_space<vmem>>, vector<16x128xf32>
    %4 = vector.shape_cast %3 : vector<16x128xf32> to vector<2x8x128xf32>
    %c0_2 = arith.constant 0 : index
    %c16 = arith.constant 16 : index
    %c0_3 = arith.constant 0 : index
    %c0_4 = arith.constant 0 : index
    %5 = vector.load %arg3[%c0_2, %c16, %c0_3, %c0_4] : memref<1x17x8x128xf32, #tpu.memory_space<vmem>>, vector<1x1x8x128xf32>
    %6 = vector.shape_cast %5 : vector<1x1x8x128xf32> to vector<8x128xf32>
    %7 = arith.mulf %4, %4 : vector<2x8x128xf32>
    %cst = arith.constant dense<0.000000e+00> : vector<8x128xf32>
    %8 = vector.multi_reduction <add>, %7, %cst [0] : vector<2x8x128xf32> to vector<8x128xf32>
    %9 = arith.addf %6, %8 : vector<8x128xf32>
    %c0_5 = arith.constant 0 : index
    %c16_6 = arith.constant 16 : index
    %c0_7 = arith.constant 0 : index
    %c0_8 = arith.constant 0 : index
    %10 = vector.load %arg3[%c0_5, %c16_6, %c0_7, %c0_8] : memref<1x17x8x128xf32, #tpu.memory_space<vmem>>, vector<1x1x8x128xf32>
    %11 = vector.shape_cast %10 : vector<1x1x8x128xf32> to vector<8x128xf32>
    %12 = vector.shape_cast %9 : vector<8x128xf32> to vector<1x1x8x128xf32>
    tpu.vector_store %arg3[%c0_5, %c16_6, %c0_7, %c0_8], %12 {strides = array<i32>} : memref<1x17x8x128xf32, #tpu.memory_space<vmem>>, vector<1x1x8x128xf32>,
    %cst_9 = arith.constant 1.280000e+02 : f32
    %13 = vector.broadcast %cst_9 : f32 to vector<2x8x128xf32>
    %14 = arith.mulf %4, %13 : vector<2x8x128xf32>
    %15 = math.roundeven %14 : vector<2x8x128xf32>
    %cst_10 = arith.constant -1.280000e+02 : f32
    %cst_11 = arith.constant 1.270000e+02 : f32
    %16 = vector.broadcast %cst_10 : f32 to vector<2x8x128xf32>
    %17 = arith.maximumf %16, %15 : vector<2x8x128xf32>
    %18 = vector.broadcast %cst_11 : f32 to vector<2x8x128xf32>
    %19 = arith.minimumf %18, %17 : vector<2x8x128xf32>
    %c0_12 = arith.constant 0 : index
    %c0_13 = arith.constant 0 : index
    %c0_14 = arith.constant 0 : index
    %c0_15 = arith.constant 0 : index
    %20 = vector.load %arg3[%c0_12, %c0_13, %c0_14, %c0_15] : memref<1x17x8x128xf32, #tpu.memory_space<vmem>>, vector<1x1x8x128xf32>
    %21 = vector.shape_cast %20 : vector<1x1x8x128xf32> to vector<8x128xf32>
    %22 = arith.mulf %4, %19 : vector<2x8x128xf32>
    %cst_16 = arith.constant dense<0.000000e+00> : vector<8x128xf32>
    %23 = vector.multi_reduction <add>, %22, %cst_16 [0] : vector<2x8x128xf32> to vector<8x128xf32>
    %24 = arith.addf %21, %23 : vector<8x128xf32>
    %c0_17 = arith.constant 0 : index
    %c0_18 = arith.constant 0 : index
    %c0_19 = arith.constant 0 : index
    %c0_20 = arith.constant 0 : index
    %25 = vector.load %arg3[%c0_17, %c0_18, %c0_19, %c0_20] : memref<1x17x8x128xf32, #tpu.memory_space<vmem>>, vector<1x1x8x128xf32>
    %26 = vector.shape_cast %25 : vector<1x1x8x128xf32> to vector<8x128xf32>
    %27 = vector.shape_cast %24 : vector<8x128xf32> to vector<1x1x8x128xf32>
    tpu.vector_store %arg3[%c0_17, %c0_18, %c0_19, %c0_20], %27 {strides = array<i32>} : memref<1x17x8x128xf32, #tpu.memory_space<vmem>>, vector<1x1x8x128xf32>,
    %c0_21 = arith.constant 0 : index
    %c8 = arith.constant 8 : index
    %c0_22 = arith.constant 0 : index
    %c0_23 = arith.constant 0 : index
    %28 = vector.load %arg3[%c0_21, %c8, %c0_22, %c0_23] : memref<1x17x8x128xf32, #tpu.memory_space<vmem>>, vector<1x1x8x128xf32>
    %29 = vector.shape_cast %28 : vector<1x1x8x128xf32> to vector<8x128xf32>
    %30 = arith.mulf %19, %19 : vector<2x8x128xf32>
    %cst_24 = arith.constant dense<0.000000e+00> : vector<8x128xf32>
    %31 = vector.multi_reduction <add>, %30, %cst_24 [0] : vector<2x8x128xf32> to vector<8x128xf32>
    %32 = arith.addf %29, %31 : vector<8x128xf32>
    %c0_25 = arith.constant 0 : index
    %c8_26 = arith.constant 8 : index
    %c0_27 = arith.constant 0 : index
    %c0_28 = arith.constant 0 : index
    %33 = vector.load %arg3[%c0_25, %c8_26, %c0_27, %c0_28] : memref<1x17x8x128xf32, #tpu.memory_space<vmem>>, vector<1x1x8x128xf32>
    %34 = vector.shape_cast %33 : vector<1x1x8x128xf32> to vector<8x128xf32>
    %35 = vector.shape_cast %32 : vector<8x128xf32> to vector<1x1x8x128xf32>
    tpu.vector_store %arg3[%c0_25, %c8_26, %c0_27, %c0_28], %35 {strides = array<i32>} : memref<1x17x8x128xf32, #tpu.memory_space<vmem>>, vector<1x1x8x128xf32>,
    %cst_29 = arith.constant 6.400000e+01 : f32
    %36 = vector.broadcast %cst_29 : f32 to vector<2x8x128xf32>
    %37 = arith.mulf %4, %36 : vector<2x8x128xf32>
    %38 = math.roundeven %37 : vector<2x8x128xf32>
    %cst_30 = arith.constant -1.280000e+02 : f32
    %cst_31 = arith.constant 1.270000e+02 : f32
    %39 = vector.broadcast %cst_30 : f32 to vector<2x8x128xf32>
    %40 = arith.maximumf %39, %38 : vector<2x8x128xf32>
    %41 = vector.broadcast %cst_31 : f32 to vector<2x8x128xf32>
    %42 = arith.minimumf %41, %40 : vector<2x8x128xf32>
    %c0_32 = arith.constant 0 : index
    %c1 = arith.constant 1 : index
    %c0_33 = arith.constant 0 : index
    %c0_34 = arith.constant 0 : index
    %43 = vector.load %arg3[%c0_32, %c1, %c0_33, %c0_34] : memref<1x17x8x128xf32, #tpu.memory_space<vmem>>, vector<1x1x8x128xf32>
    %44 = vector.shape_cast %43 : vector<1x1x8x128xf32> to vector<8x128xf32>
    %45 = arith.mulf %4, %42 : vector<2x8x128xf32>
    %cst_35 = arith.constant dense<0.000000e+00> : vector<8x128xf32>
    %46 = vector.multi_reduction <add>, %45, %cst_35 [0] : vector<2x8x128xf32> to vector<8x128xf32>
    %47 = arith.addf %44, %46 : vector<8x128xf32>
    %c0_36 = arith.constant 0 : index
    %c1_37 = arith.constant 1 : index
    %c0_38 = arith.constant 0 : index
    %c0_39 = arith.constant 0 : index
    %48 = vector.load %arg3[%c0_36, %c1_37, %c0_38, %c0_39] : memref<1x17x8x128xf32, #tpu.memory_space<vmem>>, vector<1x1x8x128xf32>
    %49 = vector.shape_cast %48 : vector<1x1x8x128xf32> to vector<8x128xf32>
    %50 = vector.shape_cast %47 : vector<8x128xf32> to vector<1x1x8x128xf32>
    tpu.vector_store %arg3[%c0_36, %c1_37, %c0_38, %c0_39], %50 {strides = array<i32>} : memref<1x17x8x128xf32, #tpu.memory_space<vmem>>, vector<1x1x8x128xf32>,
    %c0_40 = arith.constant 0 : index
    %c9 = arith.constant 9 : index
    %c0_41 = arith.constant 0 : index
    %c0_42 = arith.constant 0 : index
    %51 = vector.load %arg3[%c0_40, %c9, %c0_41, %c0_42] : memref<1x17x8x128xf32, #tpu.memory_space<vmem>>, vector<1x1x8x128xf32>
    %52 = vector.shape_cast %51 : vector<1x1x8x128xf32> to vector<8x128xf32>
    %53 = arith.mulf %42, %42 : vector<2x8x128xf32>
    %cst_43 = arith.constant dense<0.000000e+00> : vector<8x128xf32>
    %54 = vector.multi_reduction <add>, %53, %cst_43 [0] : vector<2x8x128xf32> to vector<8x128xf32>
    %55 = arith.addf %52, %54 : vector<8x128xf32>
    %c0_44 = arith.constant 0 : index
    %c9_45 = arith.constant 9 : index
    %c0_46 = arith.constant 0 : index
    %c0_47 = arith.constant 0 : index
    %56 = vector.load %arg3[%c0_44, %c9_45, %c0_46, %c0_47] : memref<1x17x8x128xf32, #tpu.memory_space<vmem>>, vector<1x1x8x128xf32>
    %57 = vector.shape_cast %56 : vector<1x1x8x128xf32> to vector<8x128xf32>
    %58 = vector.shape_cast %55 : vector<8x128xf32> to vector<1x1x8x128xf32>
    tpu.vector_store %arg3[%c0_44, %c9_45, %c0_46, %c0_47], %58 {strides = array<i32>} : memref<1x17x8x128xf32, #tpu.memory_space<vmem>>, vector<1x1x8x128xf32>,
    %cst_48 = arith.constant 3.200000e+01 : f32
    %59 = vector.broadcast %cst_48 : f32 to vector<2x8x128xf32>
    %60 = arith.mulf %4, %59 : vector<2x8x128xf32>
    %61 = math.roundeven %60 : vector<2x8x128xf32>
    %cst_49 = arith.constant -1.280000e+02 : f32
    %cst_50 = arith.constant 1.270000e+02 : f32
    %62 = vector.broadcast %cst_49 : f32 to vector<2x8x128xf32>
    %63 = arith.maximumf %62, %61 : vector<2x8x128xf32>
    %64 = vector.broadcast %cst_50 : f32 to vector<2x8x128xf32>
    %65 = arith.minimumf %64, %63 : vector<2x8x128xf32>
    %c0_51 = arith.constant 0 : index
    %c2 = arith.constant 2 : index
    %c0_52 = arith.constant 0 : index
    %c0_53 = arith.constant 0 : index
    %66 = vector.load %arg3[%c0_51, %c2, %c0_52, %c0_53] : memref<1x17x8x128xf32, #tpu.memory_space<vmem>>, vector<1x1x8x128xf32>
    %67 = vector.shape_cast %66 : vector<1x1x8x128xf32> to vector<8x128xf32>
    %68 = arith.mulf %4, %65 : vector<2x8x128xf32>
    %cst_54 = arith.constant dense<0.000000e+00> : vector<8x128xf32>
    %69 = vector.multi_reduction <add>, %68, %cst_54 [0] : vector<2x8x128xf32> to vector<8x128xf32>
    %70 = arith.addf %67, %69 : vector<8x128xf32>
    %c0_55 = arith.constant 0 : index
    %c2_56 = arith.constant 2 : index
    %c0_57 = arith.constant 0 : index
    %c0_58 = arith.constant 0 : index
    %71 = vector.load %arg3[%c0_55, %c2_56, %c0_57, %c0_58] : memref<1x17x8x128xf32, #tpu.memory_space<vmem>>, vector<1x1x8x128xf32>
    %72 = vector.shape_cast %71 : vector<1x1x8x128xf32> to vector<8x128xf32>
    %73 = vector.shape_cast %70 : vector<8x128xf32> to vector<1x1x8x128xf32>
    tpu.vector_store %arg3[%c0_55, %c2_56, %c0_57, %c0_58], %73 {strides = array<i32>} : memref<1x17x8x128xf32, #tpu.memory_space<vmem>>, vector<1x1x8x128xf32>,
    %c0_59 = arith.constant 0 : index
    %c10 = arith.constant 10 : index
    %c0_60 = arith.constant 0 : index
    %c0_61 = arith.constant 0 : index
    %74 = vector.load %arg3[%c0_59, %c10, %c0_60, %c0_61] : memref<1x17x8x128xf32, #tpu.memory_space<vmem>>, vector<1x1x8x128xf32>
    %75 = vector.shape_cast %74 : vector<1x1x8x128xf32> to vector<8x128xf32>
    %76 = arith.mulf %65, %65 : vector<2x8x128xf32>
    %cst_62 = arith.constant dense<0.000000e+00> : vector<8x128xf32>
    %77 = vector.multi_reduction <add>, %76, %cst_62 [0] : vector<2x8x128xf32> to vector<8x128xf32>
    %78 = arith.addf %75, %77 : vector<8x128xf32>
    %c0_63 = arith.constant 0 : index
    %c10_64 = arith.constant 10 : index
    %c0_65 = arith.constant 0 : index
    %c0_66 = arith.constant 0 : index
    %79 = vector.load %arg3[%c0_63, %c10_64, %c0_65, %c0_66] : memref<1x17x8x128xf32, #tpu.memory_space<vmem>>, vector<1x1x8x128xf32>
    %80 = vector.shape_cast %79 : vector<1x1x8x128xf32> to vector<8x128xf32>
    %81 = vector.shape_cast %78 : vector<8x128xf32> to vector<1x1x8x128xf32>
    tpu.vector_store %arg3[%c0_63, %c10_64, %c0_65, %c0_66], %81 {strides = array<i32>} : memref<1x17x8x128xf32, #tpu.memory_space<vmem>>, vector<1x1x8x128xf32>,
    %cst_67 = arith.constant 1.600000e+01 : f32
    %82 = vector.broadcast %cst_67 : f32 to vector<2x8x128xf32>
    %83 = arith.mulf %4, %82 : vector<2x8x128xf32>
    %84 = math.roundeven %83 : vector<2x8x128xf32>
    %cst_68 = arith.constant -1.280000e+02 : f32
    %cst_69 = arith.constant 1.270000e+02 : f32
    %85 = vector.broadcast %cst_68 : f32 to vector<2x8x128xf32>
    %86 = arith.maximumf %85, %84 : vector<2x8x128xf32>
    %87 = vector.broadcast %cst_69 : f32 to vector<2x8x128xf32>
    %88 = arith.minimumf %87, %86 : vector<2x8x128xf32>
    %c0_70 = arith.constant 0 : index
    %c3 = arith.constant 3 : index
    %c0_71 = arith.constant 0 : index
    %c0_72 = arith.constant 0 : index
    %89 = vector.load %arg3[%c0_70, %c3, %c0_71, %c0_72] : memref<1x17x8x128xf32, #tpu.memory_space<vmem>>, vector<1x1x8x128xf32>
    %90 = vector.shape_cast %89 : vector<1x1x8x128xf32> to vector<8x128xf32>
    %91 = arith.mulf %4, %88 : vector<2x8x128xf32>
    %cst_73 = arith.constant dense<0.000000e+00> : vector<8x128xf32>
    %92 = vector.multi_reduction <add>, %91, %cst_73 [0] : vector<2x8x128xf32> to vector<8x128xf32>
    %93 = arith.addf %90, %92 : vector<8x128xf32>
    %c0_74 = arith.constant 0 : index
    %c3_75 = arith.constant 3 : index
    %c0_76 = arith.constant 0 : index
    %c0_77 = arith.constant 0 : index
    %94 = vector.load %arg3[%c0_74, %c3_75, %c0_76, %c0_77] : memref<1x17x8x128xf32, #tpu.memory_space<vmem>>, vector<1x1x8x128xf32>
    %95 = vector.shape_cast %94 : vector<1x1x8x128xf32> to vector<8x128xf32>
    %96 = vector.shape_cast %93 : vector<8x128xf32> to vector<1x1x8x128xf32>
    tpu.vector_store %arg3[%c0_74, %c3_75, %c0_76, %c0_77], %96 {strides = array<i32>} : memref<1x17x8x128xf32, #tpu.memory_space<vmem>>, vector<1x1x8x128xf32>,
    %c0_78 = arith.constant 0 : index
    %c11 = arith.constant 11 : index
    %c0_79 = arith.constant 0 : index
    %c0_80 = arith.constant 0 : index
    %97 = vector.load %arg3[%c0_78, %c11, %c0_79, %c0_80] : memref<1x17x8x128xf32, #tpu.memory_space<vmem>>, vector<1x1x8x128xf32>
    %98 = vector.shape_cast %97 : vector<1x1x8x128xf32> to vector<8x128xf32>
    %99 = arith.mulf %88, %88 : vector<2x8x128xf32>
    %cst_81 = arith.constant dense<0.000000e+00> : vector<8x128xf32>
    %100 = vector.multi_reduction <add>, %99, %cst_81 [0] : vector<2x8x128xf32> to vector<8x128xf32>
    %101 = arith.addf %98, %100 : vector<8x128xf32>
    %c0_82 = arith.constant 0 : index
    %c11_83 = arith.constant 11 : index
    %c0_84 = arith.constant 0 : index
    %c0_85 = arith.constant 0 : index
    %102 = vector.load %arg3[%c0_82, %c11_83, %c0_84, %c0_85] : memref<1x17x8x128xf32, #tpu.memory_space<vmem>>, vector<1x1x8x128xf32>
    %103 = vector.shape_cast %102 : vector<1x1x8x128xf32> to vector<8x128xf32>
    %104 = vector.shape_cast %101 : vector<8x128xf32> to vector<1x1x8x128xf32>
    tpu.vector_store %arg3[%c0_82, %c11_83, %c0_84, %c0_85], %104 {strides = array<i32>} : memref<1x17x8x128xf32, #tpu.memory_space<vmem>>, vector<1x1x8x128xf32>,
    %cst_86 = arith.constant 8.000000e+00 : f32
    %105 = vector.broadcast %cst_86 : f32 to vector<2x8x128xf32>
    %106 = arith.mulf %4, %105 : vector<2x8x128xf32>
    %107 = math.roundeven %106 : vector<2x8x128xf32>
    %cst_87 = arith.constant -1.280000e+02 : f32
    %cst_88 = arith.constant 1.270000e+02 : f32
    %108 = vector.broadcast %cst_87 : f32 to vector<2x8x128xf32>
    %109 = arith.maximumf %108, %107 : vector<2x8x128xf32>
    %110 = vector.broadcast %cst_88 : f32 to vector<2x8x128xf32>
    %111 = arith.minimumf %110, %109 : vector<2x8x128xf32>
    %c0_89 = arith.constant 0 : index
    %c4 = arith.constant 4 : index
    %c0_90 = arith.constant 0 : index
    %c0_91 = arith.constant 0 : index
    %112 = vector.load %arg3[%c0_89, %c4, %c0_90, %c0_91] : memref<1x17x8x128xf32, #tpu.memory_space<vmem>>, vector<1x1x8x128xf32>
    %113 = vector.shape_cast %112 : vector<1x1x8x128xf32> to vector<8x128xf32>
    %114 = arith.mulf %4, %111 : vector<2x8x128xf32>
    %cst_92 = arith.constant dense<0.000000e+00> : vector<8x128xf32>
    %115 = vector.multi_reduction <add>, %114, %cst_92 [0] : vector<2x8x128xf32> to vector<8x128xf32>
    %116 = arith.addf %113, %115 : vector<8x128xf32>
    %c0_93 = arith.constant 0 : index
    %c4_94 = arith.constant 4 : index
    %c0_95 = arith.constant 0 : index
    %c0_96 = arith.constant 0 : index
    %117 = vector.load %arg3[%c0_93, %c4_94, %c0_95, %c0_96] : memref<1x17x8x128xf32, #tpu.memory_space<vmem>>, vector<1x1x8x128xf32>
    %118 = vector.shape_cast %117 : vector<1x1x8x128xf32> to vector<8x128xf32>
    %119 = vector.shape_cast %116 : vector<8x128xf32> to vector<1x1x8x128xf32>
    tpu.vector_store %arg3[%c0_93, %c4_94, %c0_95, %c0_96], %119 {strides = array<i32>} : memref<1x17x8x128xf32, #tpu.memory_space<vmem>>, vector<1x1x8x128xf32>,
    %c0_97 = arith.constant 0 : index
    %c12 = arith.constant 12 : index
    %c0_98 = arith.constant 0 : index
    %c0_99 = arith.constant 0 : index
    %120 = vector.load %arg3[%c0_97, %c12, %c0_98, %c0_99] : memref<1x17x8x128xf32, #tpu.memory_space<vmem>>, vector<1x1x8x128xf32>
    %121 = vector.shape_cast %120 : vector<1x1x8x128xf32> to vector<8x128xf32>
    %122 = arith.mulf %111, %111 : vector<2x8x128xf32>
    %cst_100 = arith.constant dense<0.000000e+00> : vector<8x128xf32>
    %123 = vector.multi_reduction <add>, %122, %cst_100 [0] : vector<2x8x128xf32> to vector<8x128xf32>
    %124 = arith.addf %121, %123 : vector<8x128xf32>
    %c0_101 = arith.constant 0 : index
    %c12_102 = arith.constant 12 : index
    %c0_103 = arith.constant 0 : index
    %c0_104 = arith.constant 0 : index
    %125 = vector.load %arg3[%c0_101, %c12_102, %c0_103, %c0_104] : memref<1x17x8x128xf32, #tpu.memory_space<vmem>>, vector<1x1x8x128xf32>
    %126 = vector.shape_cast %125 : vector<1x1x8x128xf32> to vector<8x128xf32>
    %127 = vector.shape_cast %124 : vector<8x128xf32> to vector<1x1x8x128xf32>
    tpu.vector_store %arg3[%c0_101, %c12_102, %c0_103, %c0_104], %127 {strides = array<i32>} : memref<1x17x8x128xf32, #tpu.memory_space<vmem>>, vector<1x1x8x128xf32>,
    %cst_105 = arith.constant 4.000000e+00 : f32
    %128 = vector.broadcast %cst_105 : f32 to vector<2x8x128xf32>
    %129 = arith.mulf %4, %128 : vector<2x8x128xf32>
    %130 = math.roundeven %129 : vector<2x8x128xf32>
    %cst_106 = arith.constant -1.280000e+02 : f32
    %cst_107 = arith.constant 1.270000e+02 : f32
    %131 = vector.broadcast %cst_106 : f32 to vector<2x8x128xf32>
    %132 = arith.maximumf %131, %130 : vector<2x8x128xf32>
    %133 = vector.broadcast %cst_107 : f32 to vector<2x8x128xf32>
    %134 = arith.minimumf %133, %132 : vector<2x8x128xf32>
    %c0_108 = arith.constant 0 : index
    %c5 = arith.constant 5 : index
    %c0_109 = arith.constant 0 : index
    %c0_110 = arith.constant 0 : index
    %135 = vector.load %arg3[%c0_108, %c5, %c0_109, %c0_110] : memref<1x17x8x128xf32, #tpu.memory_space<vmem>>, vector<1x1x8x128xf32>
    %136 = vector.shape_cast %135 : vector<1x1x8x128xf32> to vector<8x128xf32>
    %137 = arith.mulf %4, %134 : vector<2x8x128xf32>
    %cst_111 = arith.constant dense<0.000000e+00> : vector<8x128xf32>
    %138 = vector.multi_reduction <add>, %137, %cst_111 [0] : vector<2x8x128xf32> to vector<8x128xf32>
    %139 = arith.addf %136, %138 : vector<8x128xf32>
    %c0_112 = arith.constant 0 : index
    %c5_113 = arith.constant 5 : index
    %c0_114 = arith.constant 0 : index
    %c0_115 = arith.constant 0 : index
    %140 = vector.load %arg3[%c0_112, %c5_113, %c0_114, %c0_115] : memref<1x17x8x128xf32, #tpu.memory_space<vmem>>, vector<1x1x8x128xf32>
    %141 = vector.shape_cast %140 : vector<1x1x8x128xf32> to vector<8x128xf32>
    %142 = vector.shape_cast %139 : vector<8x128xf32> to vector<1x1x8x128xf32>
    tpu.vector_store %arg3[%c0_112, %c5_113, %c0_114, %c0_115], %142 {strides = array<i32>} : memref<1x17x8x128xf32, #tpu.memory_space<vmem>>, vector<1x1x8x128xf32>,
    %c0_116 = arith.constant 0 : index
    %c13 = arith.constant 13 : index
    %c0_117 = arith.constant 0 : index
    %c0_118 = arith.constant 0 : index
    %143 = vector.load %arg3[%c0_116, %c13, %c0_117, %c0_118] : memref<1x17x8x128xf32, #tpu.memory_space<vmem>>, vector<1x1x8x128xf32>
    %144 = vector.shape_cast %143 : vector<1x1x8x128xf32> to vector<8x128xf32>
    %145 = arith.mulf %134, %134 : vector<2x8x128xf32>
    %cst_119 = arith.constant dense<0.000000e+00> : vector<8x128xf32>
    %146 = vector.multi_reduction <add>, %145, %cst_119 [0] : vector<2x8x128xf32> to vector<8x128xf32>
    %147 = arith.addf %144, %146 : vector<8x128xf32>
    %c0_120 = arith.constant 0 : index
    %c13_121 = arith.constant 13 : index
    %c0_122 = arith.constant 0 : index
    %c0_123 = arith.constant 0 : index
    %148 = vector.load %arg3[%c0_120, %c13_121, %c0_122, %c0_123] : memref<1x17x8x128xf32, #tpu.memory_space<vmem>>, vector<1x1x8x128xf32>
    %149 = vector.shape_cast %148 : vector<1x1x8x128xf32> to vector<8x128xf32>
    %150 = vector.shape_cast %147 : vector<8x128xf32> to vector<1x1x8x128xf32>
    tpu.vector_store %arg3[%c0_120, %c13_121, %c0_122, %c0_123], %150 {strides = array<i32>} : memref<1x17x8x128xf32, #tpu.memory_space<vmem>>, vector<1x1x8x128xf32>,
    %cst_124 = arith.constant 2.000000e+00 : f32
    %151 = vector.broadcast %cst_124 : f32 to vector<2x8x128xf32>
    %152 = arith.mulf %4, %151 : vector<2x8x128xf32>
    %153 = math.roundeven %152 : vector<2x8x128xf32>
    %cst_125 = arith.constant -1.280000e+02 : f32
    %cst_126 = arith.constant 1.270000e+02 : f32
    %154 = vector.broadcast %cst_125 : f32 to vector<2x8x128xf32>
    %155 = arith.maximumf %154, %153 : vector<2x8x128xf32>
    %156 = vector.broadcast %cst_126 : f32 to vector<2x8x128xf32>
    %157 = arith.minimumf %156, %155 : vector<2x8x128xf32>
    %c0_127 = arith.constant 0 : index
    %c6 = arith.constant 6 : index
    %c0_128 = arith.constant 0 : index
    %c0_129 = arith.constant 0 : index
    %158 = vector.load %arg3[%c0_127, %c6, %c0_128, %c0_129] : memref<1x17x8x128xf32, #tpu.memory_space<vmem>>, vector<1x1x8x128xf32>
    %159 = vector.shape_cast %158 : vector<1x1x8x128xf32> to vector<8x128xf32>
    %160 = arith.mulf %4, %157 : vector<2x8x128xf32>
    %cst_130 = arith.constant dense<0.000000e+00> : vector<8x128xf32>
    %161 = vector.multi_reduction <add>, %160, %cst_130 [0] : vector<2x8x128xf32> to vector<8x128xf32>
    %162 = arith.addf %159, %161 : vector<8x128xf32>
    %c0_131 = arith.constant 0 : index
    %c6_132 = arith.constant 6 : index
    %c0_133 = arith.constant 0 : index
    %c0_134 = arith.constant 0 : index
    %163 = vector.load %arg3[%c0_131, %c6_132, %c0_133, %c0_134] : memref<1x17x8x128xf32, #tpu.memory_space<vmem>>, vector<1x1x8x128xf32>
    %164 = vector.shape_cast %163 : vector<1x1x8x128xf32> to vector<8x128xf32>
    %165 = vector.shape_cast %162 : vector<8x128xf32> to vector<1x1x8x128xf32>
    tpu.vector_store %arg3[%c0_131, %c6_132, %c0_133, %c0_134], %165 {strides = array<i32>} : memref<1x17x8x128xf32, #tpu.memory_space<vmem>>, vector<1x1x8x128xf32>,
    %c0_135 = arith.constant 0 : index
    %c14 = arith.constant 14 : index
    %c0_136 = arith.constant 0 : index
    %c0_137 = arith.constant 0 : index
    %166 = vector.load %arg3[%c0_135, %c14, %c0_136, %c0_137] : memref<1x17x8x128xf32, #tpu.memory_space<vmem>>, vector<1x1x8x128xf32>
    %167 = vector.shape_cast %166 : vector<1x1x8x128xf32> to vector<8x128xf32>
    %168 = arith.mulf %157, %157 : vector<2x8x128xf32>
    %cst_138 = arith.constant dense<0.000000e+00> : vector<8x128xf32>
    %169 = vector.multi_reduction <add>, %168, %cst_138 [0] : vector<2x8x128xf32> to vector<8x128xf32>
    %170 = arith.addf %167, %169 : vector<8x128xf32>
    %c0_139 = arith.constant 0 : index
    %c14_140 = arith.constant 14 : index
    %c0_141 = arith.constant 0 : index
    %c0_142 = arith.constant 0 : index
    %171 = vector.load %arg3[%c0_139, %c14_140, %c0_141, %c0_142] : memref<1x17x8x128xf32, #tpu.memory_space<vmem>>, vector<1x1x8x128xf32>
    %172 = vector.shape_cast %171 : vector<1x1x8x128xf32> to vector<8x128xf32>
    %173 = vector.shape_cast %170 : vector<8x128xf32> to vector<1x1x8x128xf32>
    tpu.vector_store %arg3[%c0_139, %c14_140, %c0_141, %c0_142], %173 {strides = array<i32>} : memref<1x17x8x128xf32, #tpu.memory_space<vmem>>, vector<1x1x8x128xf32>,
    %cst_143 = arith.constant 1.000000e+00 : f32
    %174 = vector.broadcast %cst_143 : f32 to vector<2x8x128xf32>
    %175 = arith.mulf %4, %174 : vector<2x8x128xf32>
    %176 = math.roundeven %175 : vector<2x8x128xf32>
    %cst_144 = arith.constant -1.280000e+02 : f32
    %cst_145 = arith.constant 1.270000e+02 : f32
    %177 = vector.broadcast %cst_144 : f32 to vector<2x8x128xf32>
    %178 = arith.maximumf %177, %176 : vector<2x8x128xf32>
    %179 = vector.broadcast %cst_145 : f32 to vector<2x8x128xf32>
    %180 = arith.minimumf %179, %178 : vector<2x8x128xf32>
    %c0_146 = arith.constant 0 : index
    %c7 = arith.constant 7 : index
    %c0_147 = arith.constant 0 : index
    %c0_148 = arith.constant 0 : index
    %181 = vector.load %arg3[%c0_146, %c7, %c0_147, %c0_148] : memref<1x17x8x128xf32, #tpu.memory_space<vmem>>, vector<1x1x8x128xf32>
    %182 = vector.shape_cast %181 : vector<1x1x8x128xf32> to vector<8x128xf32>
    %183 = arith.mulf %4, %180 : vector<2x8x128xf32>
    %cst_149 = arith.constant dense<0.000000e+00> : vector<8x128xf32>
    %184 = vector.multi_reduction <add>, %183, %cst_149 [0] : vector<2x8x128xf32> to vector<8x128xf32>
    %185 = arith.addf %182, %184 : vector<8x128xf32>
    %c0_150 = arith.constant 0 : index
    %c7_151 = arith.constant 7 : index
    %c0_152 = arith.constant 0 : index
    %c0_153 = arith.constant 0 : index
    %186 = vector.load %arg3[%c0_150, %c7_151, %c0_152, %c0_153] : memref<1x17x8x128xf32, #tpu.memory_space<vmem>>, vector<1x1x8x128xf32>
    %187 = vector.shape_cast %186 : vector<1x1x8x128xf32> to vector<8x128xf32>
    %188 = vector.shape_cast %185 : vector<8x128xf32> to vector<1x1x8x128xf32>
    tpu.vector_store %arg3[%c0_150, %c7_151, %c0_152, %c0_153], %188 {strides = array<i32>} : memref<1x17x8x128xf32, #tpu.memory_space<vmem>>, vector<1x1x8x128xf32>,
    %c0_154 = arith.constant 0 : index
    %c15 = arith.constant 15 : index
    %c0_155 = arith.constant 0 : index
    %c0_156 = arith.constant 0 : index
    %189 = vector.load %arg3[%c0_154, %c15, %c0_155, %c0_156] : memref<1x17x8x128xf32, #tpu.memory_space<vmem>>, vector<1x1x8x128xf32>
    %190 = vector.shape_cast %189 : vector<1x1x8x128xf32> to vector<8x128xf32>
    %191 = arith.mulf %180, %180 : vector<2x8x128xf32>
    %cst_157 = arith.constant dense<0.000000e+00> : vector<8x128xf32>
    %192 = vector.multi_reduction <add>, %191, %cst_157 [0] : vector<2x8x128xf32> to vector<8x128xf32>
    %193 = arith.addf %190, %192 : vector<8x128xf32>
    %c0_158 = arith.constant 0 : index
    %c15_159 = arith.constant 15 : index
    %c0_160 = arith.constant 0 : index
    %c0_161 = arith.constant 0 : index
    %194 = vector.load %arg3[%c0_158, %c15_159, %c0_160, %c0_161] : memref<1x17x8x128xf32, #tpu.memory_space<vmem>>, vector<1x1x8x128xf32>
    %195 = vector.shape_cast %194 : vector<1x1x8x128xf32> to vector<8x128xf32>
    %196 = vector.shape_cast %193 : vector<8x128xf32> to vector<1x1x8x128xf32>
    tpu.vector_store %arg3[%c0_158, %c15_159, %c0_160, %c0_161], %196 {strides = array<i32>} : memref<1x17x8x128xf32, #tpu.memory_space<vmem>>, vector<1x1x8x128xf32>,
    return
  }
  func.func @transform_0(%arg0: i32, %arg1: i32) -> (i32, i32) {
    %c1_i32 = arith.constant 1 : i32
    %0 = arith.muli %arg0, %c1_i32 : i32
    %1 = arith.addi %0, %arg1 : i32
    %c0_i32 = arith.constant 0 : i32
    %c0_i32_0 = arith.constant 0 : i32
    return %1, %c0_i32 : i32, i32
  }
  func.func @transform_1(%arg0: i32, %arg1: i32) -> (i32, i32, i32, i32) {
    %c0_i32 = arith.constant 0 : i32
    %c0_i32_0 = arith.constant 0 : i32
    %c0_i32_1 = arith.constant 0 : i32
    %c0_i32_2 = arith.constant 0 : i32
    return %arg0, %c0_i32, %c0_i32_0, %c0_i32_1 : i32, i32, i32, i32
  }
}

</mosaic_0001>

<llo_original>
// kernel: tpu_custom_call.1
$region0: #{tpu_custom_call.1}
  #allocation0 [shape = 'u32[]', space=smem, size = 0x4, offset = 0x4, fixed_abs, tag = 'smem constant byte address 0x4 - core index']
  #allocation1 [shape = 'u32[144,128]{1,0:T(1,128)}', space=vmem, size = 0x12000, scoped, tag = 'internal scratch']
  %s0 = inlined_call_operand.hbm [shape: f32[16,128], index: 0, kind: input, shape index: {}]
  %s1 = inlined_call_operand.hbm [shape: f32[1,17,8,128], index: 1, kind: output, shape index: {}]
  %s2 = sld [smem:[#allocation0]]
  $region22: #{tpu_custom_call.1} parent=0
    _
  %s4 = ssub.s32 1, %s2
  %s5 = scalar_select 0, %s4, %s2
  $region1: #{tpu_custom_call.1} parent=0
    #allocation2 [shape = 'u8[8192]{0}', space=vmem, size = 0x2000, scoped, tag = 'input window, operand 0, single buffered']
    #allocation3 [shape = 's32[1]{0}', space=sflag, size = 0x4, scoped, tag = 'scoped memory for tpu_custom_call.1']
    #allocation4 [shape = 's32[1]{0}', space=sflag, size = 0x4, scoped, tag = 'scoped memory for tpu_custom_call.1']
    #allocation5 [shape = 'u8[69632]{0}', space=vmem, size = 0x11000, scoped, tag = 'output window, operand 0, single buffered']
    %6 = vsyncpa [#allocation3], 0
    %7 = vsyncpa [#allocation4], 0
    // Predicated region
    $region2: #{tpu_custom_call.1} parent=1 // pred_check
      _
    $region3: #{tpu_custom_call.1} parent=1 // pred_check_branch
      %9 = sbr.rel (0) target = $region5
    $region4: #{tpu_custom_call.1} parent=1 // pred_region
      %s10 = sadd.s32 0, 0
      %s11 = smul.u32 2, %s10
      %s13 = ssub.s32 256, 256
      %14 = vsyncadd [#allocation3], %s13
      %s15 = smul.addr %s11, 128
      %s16 = scalar_lea.hbm %s0, %s15
      %s17 = sshll.u32 [#allocation2], 4
      %s18 = int_to_ptr.vmem [resolvable:$true] %s17
      %23 = dma.hbm_to_vmem [thread:$0]  %s16, 256, %s18, [#allocation3], 128, 128, 8
    $region5: #{tpu_custom_call.1} parent=1 // pred_fallthru
      _
    // Predicated region
    $region6: #{tpu_custom_call.1} parent=1 // pred_check
      _
    $region7: #{tpu_custom_call.1} parent=1 // pred_check_branch
      %25 = sbr.rel (0) target = $region9
    $region8: #{tpu_custom_call.1} parent=1 // pred_region
      %26 = dma.done [#allocation3], 256
    $region9: #{tpu_custom_call.1} parent=1 // pred_fallthru
      _
    %s27 = sadd.s32 0, 0
    %s28 = smul.u32 2, %s27
    %p29 = scmp.eq.s32.totalorder 0, 0
    // Predicated region
    $region10: #{tpu_custom_call.1} parent=1 // pred_check
      %p30 = pneg %p29
    $region11: #{tpu_custom_call.1} parent=1 // pred_check_branch
      %32 = sbr.rel (%p30) target = $region13
    $region12: #{tpu_custom_call.1} parent=1 // pred_region
      %33 = vst [vmem:[#allocation5] sm:$0xff] 0.0
      %34 = vst [vmem:[#allocation5 + $0x8] sm:$0xff] 0.0
      %35 = vst [vmem:[#allocation5 + $0x10] sm:$0xff] 0.0
      %36 = vst [vmem:[#allocation5 + $0x18] sm:$0xff] 0.0
      %37 = vst [vmem:[#allocation5 + $0x20] sm:$0xff] 0.0
      %38 = vst [vmem:[#allocation5 + $0x28] sm:$0xff] 0.0
      %39 = vst [vmem:[#allocation5 + $0x30] sm:$0xff] 0.0
      %40 = vst [vmem:[#allocation5 + $0x38] sm:$0xff] 0.0
      %41 = vst [vmem:[#allocation5 + $0x40] sm:$0xff] 0.0
      %42 = vst [vmem:[#allocation5 + $0x48] sm:$0xff] 0.0
      %43 = vst [vmem:[#allocation5 + $0x50] sm:$0xff] 0.0
      %44 = vst [vmem:[#allocation5 + $0x58] sm:$0xff] 0.0
      %45 = vst [vmem:[#allocation5 + $0x60] sm:$0xff] 0.0
      %46 = vst [vmem:[#allocation5 + $0x68] sm:$0xff] 0.0
      %47 = vst [vmem:[#allocation5 + $0x70] sm:$0xff] 0.0
      %48 = vst [vmem:[#allocation5 + $0x78] sm:$0xff] 0.0
      %49 = vst [vmem:[#allocation5 + $0x80] sm:$0xff] 0.0
    $region13: #{tpu_custom_call.1} parent=1 // pred_fallthru
      _
    %v50 = vld [vmem:[#allocation2] sm:$0xff]
    %v51 = vld [vmem:[#allocation2 + $0x8] sm:$0xff]
    %s52 = scalar_lea.vmem [#allocation5], 128
    %v53 = vld [vmem:[%s52] sm:$0xff]
    %v54 = vmul.f32 %v50, %v50
    %v55 = vmul.f32 %v51, %v51
    %v56 = vadd.f32 %v54, %v55
    %v57 = vadd.f32 %v53, %v56
    %58 = vst [vmem:[%s52] sm:$0xff] %v57
    %v59 = vmul.f32 %v50, 128.0
    %v60 = vmul.f32 %v51, 128.0
    %v61 = vround.ne.pseudo %v59
    %v62 = vround.ne.pseudo %v60
    %v63 = vmax.f32 %v61, -128.0
    %v64 = vmax.f32 %v62, -128.0
    %v65 = vmin.f32 %v63, 127.0
    %v66 = vmin.f32 %v64, 127.0
    %v67 = vld [vmem:[#allocation5] sm:$0xff]
    %v68 = vmul.f32 %v50, %v65
    %v69 = vmul.f32 %v51, %v66
    %v70 = vadd.f32 %v68, %v69
    %v71 = vadd.f32 %v67, %v70
    %72 = vst [vmem:[#allocation5] sm:$0xff] %v71
    %s73 = scalar_lea.vmem [#allocation5], 64
    %v74 = vld [vmem:[%s73] sm:$0xff]
    %v75 = vmul.f32 %v65, %v65
    %v76 = vmul.f32 %v66, %v66
    %v77 = vadd.f32 %v75, %v76
    %v78 = vadd.f32 %v74, %v77
    %79 = vst [vmem:[%s73] sm:$0xff] %v78
    %v80 = vmul.f32 %v50, 64.0
    %v81 = vmul.f32 %v51, 64.0
    %v82 = vround.ne.pseudo %v80
    %v83 = vround.ne.pseudo %v81
    %v84 = vmax.f32 %v82, -128.0
    %v85 = vmax.f32 %v83, -128.0
    %v86 = vmin.f32 %v84, 127.0
    %v87 = vmin.f32 %v85, 127.0
    %s88 = scalar_lea.vmem [#allocation5], 8
    %v89 = vld [vmem:[%s88] sm:$0xff]
    %v90 = vmul.f32 %v50, %v86
    %v91 = vmul.f32 %v51, %v87
    %v92 = vadd.f32 %v90, %v91
    %v93 = vadd.f32 %v89, %v92
    %94 = vst [vmem:[%s88] sm:$0xff] %v93
    %s95 = scalar_lea.vmem [#allocation5], 72
    %v96 = vld [vmem:[%s95] sm:$0xff]
    %v97 = vmul.f32 %v86, %v86
    %v98 = vmul.f32 %v87, %v87
    %v99 = vadd.f32 %v97, %v98
    %v100 = vadd.f32 %v96, %v99
    %101 = vst [vmem:[%s95] sm:$0xff] %v100
    %v102 = vmul.f32 %v50, 32.0
    %v103 = vmul.f32 %v51, 32.0
    %v104 = vround.ne.pseudo %v102
    %v105 = vround.ne.pseudo %v103
    %v106 = vmax.f32 %v104, -128.0
    %v107 = vmax.f32 %v105, -128.0
    %v108 = vmin.f32 %v106, 127.0
    %v109 = vmin.f32 %v107, 127.0
    %s110 = scalar_lea.vmem [#allocation5], 16
    %v111 = vld [vmem:[%s110] sm:$0xff]
    %v112 = vmul.f32 %v50, %v108
    %v113 = vmul.f32 %v51, %v109
    %v114 = vadd.f32 %v112, %v113
    %v115 = vadd.f32 %v111, %v114
    %116 = vst [vmem:[%s110] sm:$0xff] %v115
    %s117 = scalar_lea.vmem [#allocation5], 80
    %v118 = vld [vmem:[%s117] sm:$0xff]
    %v119 = vmul.f32 %v108, %v108
    %v120 = vmul.f32 %v109, %v109
    %v121 = vadd.f32 %v119, %v120
    %v122 = vadd.f32 %v118, %v121
    %123 = vst [vmem:[%s117] sm:$0xff] %v122
    %v124 = vmul.f32 %v50, 16.0
    %v125 = vmul.f32 %v51, 16.0
    %v126 = vround.ne.pseudo %v124
    %v127 = vround.ne.pseudo %v125
    %v128 = vmax.f32 %v126, -128.0
    %v129 = vmax.f32 %v127, -128.0
    %v130 = vmin.f32 %v128, 127.0
    %v131 = vmin.f32 %v129, 127.0
    %s132 = scalar_lea.vmem [#allocation5], 24
    %v133 = vld [vmem:[%s132] sm:$0xff]
    %v134 = vmul.f32 %v50, %v130
    %v135 = vmul.f32 %v51, %v131
    %v136 = vadd.f32 %v134, %v135
    %v137 = vadd.f32 %v133, %v136
    %138 = vst [vmem:[%s132] sm:$0xff] %v137
    %s139 = scalar_lea.vmem [#allocation5], 88
    %v140 = vld [vmem:[%s139] sm:$0xff]
    %v141 = vmul.f32 %v130, %v130
    %v142 = vmul.f32 %v131, %v131
    %v143 = vadd.f32 %v141, %v142
    %v144 = vadd.f32 %v140, %v143
    %145 = vst [vmem:[%s139] sm:$0xff] %v144
    %v146 = vmul.f32 %v50, 8.0
    %v147 = vmul.f32 %v51, 8.0
    %v148 = vround.ne.pseudo %v146
    %v149 = vround.ne.pseudo %v147
    %v150 = vmax.f32 %v148, -128.0
    %v151 = vmax.f32 %v149, -128.0
    %v152 = vmin.f32 %v150, 127.0
    %v153 = vmin.f32 %v151, 127.0
    %s154 = scalar_lea.vmem [#allocation5], 32
    %v155 = vld [vmem:[%s154] sm:$0xff]
    %v156 = vmul.f32 %v50, %v152
    %v157 = vmul.f32 %v51, %v153
    %v158 = vadd.f32 %v156, %v157
    %v159 = vadd.f32 %v155, %v158
    %160 = vst [vmem:[%s154] sm:$0xff] %v159
    %s161 = scalar_lea.vmem [#allocation5], 96
    %v162 = vld [vmem:[%s161] sm:$0xff]
    %v163 = vmul.f32 %v152, %v152
    %v164 = vmul.f32 %v153, %v153
    %v165 = vadd.f32 %v163, %v164
    %v166 = vadd.f32 %v162, %v165
    %167 = vst [vmem:[%s161] sm:$0xff] %v166
    %v168 = vmul.f32 %v50, 4.0
    %v169 = vmul.f32 %v51, 4.0
    %v170 = vround.ne.pseudo %v168
    %v171 = vround.ne.pseudo %v169
    %v172 = vmax.f32 %v170, -128.0
    %v173 = vmax.f32 %v171, -128.0
    %v174 = vmin.f32 %v172, 127.0
    %v175 = vmin.f32 %v173, 127.0
    %s176 = scalar_lea.vmem [#allocation5], 40
    %v177 = vld [vmem:[%s176] sm:$0xff]
    %v178 = vmul.f32 %v50, %v174
    %v179 = vmul.f32 %v51, %v175
    %v180 = vadd.f32 %v178, %v179
    %v181 = vadd.f32 %v177, %v180
    %182 = vst [vmem:[%s176] sm:$0xff] %v181
    %s183 = scalar_lea.vmem [#allocation5], 104
    %v184 = vld [vmem:[%s183] sm:$0xff]
    %v185 = vmul.f32 %v174, %v174
    %v186 = vmul.f32 %v175, %v175
    %v187 = vadd.f32 %v185, %v186
    %v188 = vadd.f32 %v184, %v187
    %189 = vst [vmem:[%s183] sm:$0xff] %v188
    %v190 = vmul.f32 %v50, 2.0
    %v191 = vmul.f32 %v51, 2.0
    %v192 = vround.ne.pseudo %v190
    %v193 = vround.ne.pseudo %v191
    %v194 = vmax.f32 %v192, -128.0
    %v195 = vmax.f32 %v193, -128.0
    %v196 = vmin.f32 %v194, 127.0
    %v197 = vmin.f32 %v195, 127.0
    %s198 = scalar_lea.vmem [#allocation5], 48
    %v199 = vld [vmem:[%s198] sm:$0xff]
    %v200 = vmul.f32 %v50, %v196
    %v201 = vmul.f32 %v51, %v197
    %v202 = vadd.f32 %v200, %v201
    %v203 = vadd.f32 %v199, %v202
    %204 = vst [vmem:[%s198] sm:$0xff] %v203
    %s205 = scalar_lea.vmem [#allocation5], 112
    %v206 = vld [vmem:[%s205] sm:$0xff]
    %v207 = vmul.f32 %v196, %v196
    %v208 = vmul.f32 %v197, %v197
    %v209 = vadd.f32 %v207, %v208
    %v210 = vadd.f32 %v206, %v209
    %211 = vst [vmem:[%s205] sm:$0xff] %v210
    %v212 = vround.ne.pseudo %v50
    %v213 = vround.ne.pseudo %v51
    %v214 = vmax.f32 %v212, -128.0
    %v215 = vmax.f32 %v213, -128.0
    %v216 = vmin.f32 %v214, 127.0
    %v217 = vmin.f32 %v215, 127.0
    %s218 = scalar_lea.vmem [#allocation5], 56
    %v219 = vld [vmem:[%s218] sm:$0xff]
    %v220 = vmul.f32 %v50, %v216
    %v221 = vmul.f32 %v51, %v217
    %v222 = vadd.f32 %v220, %v221
    %v223 = vadd.f32 %v219, %v222
    %224 = vst [vmem:[%s218] sm:$0xff] %v223
    %s225 = scalar_lea.vmem [#allocation5], 120
    %v226 = vld [vmem:[%s225] sm:$0xff]
    %v227 = vmul.f32 %v216, %v216
    %v228 = vmul.f32 %v217, %v217
    %v229 = vadd.f32 %v227, %v228
    %v230 = vadd.f32 %v226, %v229
    %231 = vst [vmem:[%s225] sm:$0xff] %v230
    // Predicated region
    $region14: #{tpu_custom_call.1} parent=1 // pred_check
      _
    $region15: #{tpu_custom_call.1} parent=1 // pred_check_branch
      %233 = sbr.rel (0) target = $region17
    $region16: #{tpu_custom_call.1} parent=1 // pred_region
      %s235 = ssub.s32 2176, 2176
      %236 = vsyncadd [#allocation4], %s235
      %s237 = sshll.u32 [#allocation5], 4
      %s238 = int_to_ptr.vmem [resolvable:$true] %s237
      %243 = dma.vmem_to_hbm [thread:$0]  %s238, 2176, %s1, [#allocation4], 128, 128, 8
    $region17: #{tpu_custom_call.1} parent=1 // pred_fallthru
      _
    // Predicated region
    $region18: #{tpu_custom_call.1} parent=1 // pred_check
      _
    $region19: #{tpu_custom_call.1} parent=1 // pred_check_branch
      %245 = sbr.rel (0) target = $region21
    $region20: #{tpu_custom_call.1} parent=1 // pred_region
      %246 = dma.done [#allocation4], 2176
    $region21: #{tpu_custom_call.1} parent=1 // pred_fallthru
      _
    %247 = vsyncpa [#allocation3], 1
    %248 = vsyncpa [#allocation4], 1

</llo_original>
